<compile_context>
chip_gen: v5e
topology: v5e:2x2
jax: 0.10.0
libtpu: 0.0.40
codegen_flags: <defaults>
</compile_context>

<pallas_src>
import jax
import jax.numpy as jnp
from jax.experimental import pallas as pl
from jax.experimental.pallas import tpu as pltpu

NEG_SLOPE = 0.01  # F.leaky_relu default negative_slope (module's 0.2 is unused)


# --------------------------------------------------------------------------
# prologue: node projections, tiled over node rows
# --------------------------------------------------------------------------
def gat_project_kernel(h_ref, emb_ref, wlin_ref, wsh_ref, wse_ref, wdh_ref,
                       wde_ref, z_ref, fsrc_ref, fdst_ref):
    h = h_ref[...]                                # [TILE, Cin]  f32
    emb = emb_ref[...]                            # [TILE, Cout] f32

    # z = h @ W_lin  (bf16 MXU operands, f32 accumulation)
    z = jnp.dot(h.astype(jnp.bfloat16), wlin_ref[...].astype(jnp.bfloat16),
                preferred_element_type=jnp.float32)
    z_ref[...] = z.astype(jnp.bfloat16)

    # Per-node attention logits, kept f32 (they feed the softmax).
    # f_src is produced directly as a lane-dense [1, TILE] row so the attention
    # kernel can build e[v,u] = f_dst[v] + f_src[u] with a VPU broadcast add
    # (no K=2 MXU contraction, no transposes).
    fsrc_ref[...] = (
        jax.lax.dot_general(wsh_ref[...], h, (((1,), (1,)), ((), ())),
                            preferred_element_type=jnp.float32)
        + jax.lax.dot_general(wse_ref[...], emb, (((1,), (1,)), ((), ())),
                              preferred_element_type=jnp.float32))          # [1, TILE]

    # f_dst as a [TILE, 1] column, consumed per destination-row tile downstream.
    fdst_ref[...] = (
        jnp.dot(h, wdh_ref[...], preferred_element_type=jnp.float32)
        + jnp.dot(emb, wde_ref[...], preferred_element_type=jnp.float32))   # [TILE, 1]


# --------------------------------------------------------------------------
# main kernel: masked softmax + aggregation for one destination-row tile
# --------------------------------------------------------------------------
def gat_attn_kernel(fdst_ref, fsrc_ref, adj_ref, z_ref, out_ref):
    # scores for TILE_V destination rows vs all N sources: broadcast add (VPU)
    e = fdst_ref[...] + fsrc_ref[...]                       # [TILE_V, N] f32

    # leaky_relu(e) == max(e, slope*e) for 0 < slope < 1  (mul + max, no select)
    e = jnp.maximum(e, NEG_SLOPE * e)

    # Masked softmax over sources. The adjacency mask is fused as a multiply
    # of exp(e - m): mathematically identical to -inf masking as long as
    # exp(e_edge - m) does not underflow (scores here are O(1)).
    # Zero in-degree rows produce NaN exactly like the dense reference.
    m = jnp.max(e, axis=-1, keepdims=True)
    p = jnp.exp(e - m) * adj_ref[...].astype(jnp.float32)
    denom = jnp.sum(p, axis=-1, keepdims=True)
    alpha = p * pl.reciprocal(denom, approx=True)           # EUP, ~free

    # h'[v] = sum_u alpha[v,u] * z[u]   (bf16 MXU operands, f32 accumulation)
    out_ref[...] = jnp.dot(alpha.astype(jnp.bfloat16), z_ref[...],
                           preferred_element_type=jnp.float32)


def _pick_tile(n):
    # 128-row tiles keep per-tile VMEM (adj stripe + score temporaries)
    # comfortably inside v7x's smaller scoped VMEM for realistic N, while
    # giving lane-aligned, pipelined DMA.
    for t in (128, 64, 32):
        if n % t == 0:
            return t
    return n  # fall back to a single tile


def gat_forward(h, emb, adj, w_lin, wa, wb):
    """h:[N,Cin]  emb:[N,Cout]  adj:[N,N] (adj[dst,src]!=0 -> edge src->dst)
    w_lin:[Cin,Cout]   wa, wb:[Cout,2]  (col 0 = source coeffs, col 1 = dest)."""
    N, Cin = h.shape
    Cout = w_lin.shape[1]

    h = h.astype(jnp.float32)
    emb = emb.astype(jnp.float32)
    w_lin = w_lin.astype(jnp.float32)

    # Fold the z-dependence out of the attention logits:
    #   f_src = z @ wa[:,0] + emb @ wb[:,0] = h @ (W_lin @ wa[:,0]) + emb @ wb[:,0]
    w_src_h = (w_lin @ wa[:, 0])[None, :]        # [1, Cin]
    w_src_e = wb[:, 0][None, :]                  # [1, Cout]
    w_dst_h = (w_lin @ wa[:, 1])[:, None]        # [Cin, 1]
    w_dst_e = wb[:, 1][:, None]                  # [Cout, 1]

    # int8 adjacency: 4x less HBM/DMA traffic than f32
    adj_i8 = (adj != 0).astype(jnp.int8)

    tile = _pick_tile(N)

    # ---- prologue: projections, tiled + pipelined over node rows ----
    z, f_src, f_dst = pl.pallas_call(
        gat_project_kernel,
        out_shape=(
            jax.ShapeDtypeStruct((N, Cout), jnp.bfloat16),
            jax.ShapeDtypeStruct((1, N), jnp.float32),
            jax.ShapeDtypeStruct((N, 1), jnp.float32),
        ),
        grid=(N // tile,),
        in_specs=[
            pl.BlockSpec((tile, Cin), lambda i: (i, 0)),    # h rows
            pl.BlockSpec((tile, Cout), lambda i: (i, 0)),   # emb rows
            pl.BlockSpec((Cin, Cout), lambda i: (0, 0)),    # W_lin (resident)
            pl.BlockSpec((1, Cin), lambda i: (0, 0)),       # w_src_h
            pl.BlockSpec((1, Cout), lambda i: (0, 0)),      # w_src_e
            pl.BlockSpec((Cin, 1), lambda i: (0, 0)),       # w_dst_h
            pl.BlockSpec((Cout, 1), lambda i: (0, 0)),      # w_dst_e
        ],
        out_specs=(
            pl.BlockSpec((tile, Cout), lambda i: (i, 0)),   # z rows
            pl.BlockSpec((1, tile), lambda i: (0, i)),      # f_src columns
            pl.BlockSpec((tile, 1), lambda i: (i, 0)),      # f_dst rows
        ),
        compiler_params=pltpu.CompilerParams(
            dimension_semantics=("parallel",)),
    )(h, emb, w_lin, w_src_h, w_src_e, w_dst_h, w_dst_e)

    # ---- main: attention + aggregation, tiled over destination rows ----
    # TODO(synk): for very large N, also stream source tiles with an online-
    # softmax accumulator (flash-attention style) instead of keeping z / f_src
    # / a full adjacency stripe resident along the source axis.
    out = pl.pallas_call(
        gat_attn_kernel,
        out_shape=jax.ShapeDtypeStruct((N, Cout), jnp.float32),
        grid=(N // tile,),
        in_specs=[
            pl.BlockSpec((tile, 1), lambda i: (i, 0)),      # f_dst tile
            pl.BlockSpec((1, N), lambda i: (0, 0)),         # f_src row (resident)
            pl.BlockSpec((tile, N), lambda i: (i, 0)),      # int8 adjacency stripe
            pl.BlockSpec((N, Cout), lambda i: (0, 0)),      # z (resident, bf16)
        ],
        out_specs=pl.BlockSpec((tile, Cout), lambda i: (i, 0)),
        compiler_params=pltpu.CompilerParams(
            dimension_semantics=("parallel",)),  # shard row tiles over v7x's 2 TCs
    )(f_dst, f_src, adj_i8, z)
    return out


def xavier_normal(key, shape, gain):
    # shape follows torch.nn.Linear weight convention: [fan_out, fan_in]
    fan_out, fan_in = shape
    std = gain * (2.0 / (fan_in + fan_out)) ** 0.5
    return std * jax.random.normal(key, shape, dtype=jnp.float32)


def reference_forward(h, emb, adj, w_lin, wa, wb):
    # pure-JAX dense f32 reference of the same math
    z = h @ w_lin
    f = z @ wa + emb @ wb                       # [N, 2]
    e = f[:, 1:2] + f[:, 0][None, :]            # e[v,u] = f_dst[v] + f_src[u]
    e = jnp.where(e >= 0, e, NEG_SLOPE * e)
    e = jnp.where(adj > 0, e, -jnp.inf)
    alpha = jax.nn.softmax(e, axis=-1)
    return alpha @ z


if __name__ == "__main__":
    # N padded to a multiple of 128 so the row tiling / megacore path is real
    N, Cin, Cout = 256, 16, 32  # nodes, in_channels, out_channels (heads=1)

    key = jax.random.PRNGKey(0)
    k_h, k_e, k_adj, k_lin, k_fc, k_emb = jax.random.split(key, 6)

    h = jax.random.normal(k_h, (N, Cin), dtype=jnp.float32)
    embedding = jax.random.normal(k_e, (N, Cout), dtype=jnp.float32)

    # dense adjacency with self-loops so every node has >= 1 incoming edge
    # TODO(synk): DGL sparse edge lists are represented here as a dense [N,N] mask.
    adj = (jax.random.uniform(k_adj, (N, N)) > 0.5).astype(jnp.float32)
    adj = jnp.maximum(adj, jnp.eye(N, dtype=jnp.float32))

    gain = 2.0 ** 0.5  # nn.init.calculate_gain('relu')
    lin_w = xavier_normal(k_lin, (Cout, Cin), gain)          # lin.weight        [Cout, Cin]
    fc_w = xavier_normal(k_fc, (1, 2 * Cout), gain)          # attn_fc.weight    [1, 2*Cout]
    emb_w = xavier_normal(k_emb, (1, 2 * Cout), gain)        # attn_embed.weight [1, 2*Cout]

    # glue: transpose / split weights for the kernel
    w_lin = lin_w.T                                           # [Cin, Cout]
    wa = jnp.stack([fc_w[0, :Cout], fc_w[0, Cout:]], axis=1)  # [Cout, 2] (src, dst)
    wb = jnp.stack([emb_w[0, :Cout], emb_w[0, Cout:]], axis=1)

    out = gat_forward(h, embedding, adj, w_lin, wa, wb)
    out = jax.block_until_ready(out)

    ref = reference_forward(h, embedding, adj, w_lin, wa, wb)
    assert out.shape == (N, Cout)
    # bf16 MXU operands (f32 accumulation) vs. a pure-f32 reference: use a
    # bf16-appropriate tolerance; softmax itself is f32 in the kernel.
    assert jnp.allclose(out, ref, rtol=2e-2, atol=2e-2), "mismatch vs reference"

    print("KERNEL_OK")
</pallas_src>

<mosaic_0001>
module attributes {stable_mosaic.version = 11 : i64} {
  func.func @gat_project_kernel(%arg0: i32, %arg1: memref<128x16xf32, #tpu.memory_space<vmem>>, %arg2: memref<128x32xf32, #tpu.memory_space<vmem>>, %arg3: memref<16x32xf32, #tpu.memory_space<vmem>>, %arg4: memref<1x16xf32, #tpu.memory_space<vmem>>, %arg5: memref<1x32xf32, #tpu.memory_space<vmem>>, %arg6: memref<16x1xf32, #tpu.memory_space<vmem>>, %arg7: memref<32x1xf32, #tpu.memory_space<vmem>>, %arg8: memref<128x32xbf16, #tpu.memory_space<vmem>>, %arg9: memref<1x128xf32, #tpu.memory_space<vmem>>, %arg10: memref<128x1xf32, #tpu.memory_space<vmem>>) attributes {dimension_semantics = [#tpu.dimension_semantics<parallel>], iteration_bounds = array<i64: 2>, scalar_prefetch = 0 : i64, scratch_operands = 0 : i64, tpu.core_type = #tpu.core_type<tc>, window_params = [{transform_indices = @transform_0, window_bounds = array<i64: 128, 16>}, {transform_indices = @transform_1, window_bounds = array<i64: 128, 32>}, {pipeline_mode = #tpu.pipeline_mode<synchronous>, transform_indices = @transform_2, window_bounds = array<i64: 16, 32>}, {pipeline_mode = #tpu.pipeline_mode<synchronous>, transform_indices = @transform_3, window_bounds = array<i64: 1, 16>}, {pipeline_mode = #tpu.pipeline_mode<synchronous>, transform_indices = @transform_4, window_bounds = array<i64: 1, 32>}, {pipeline_mode = #tpu.pipeline_mode<synchronous>, transform_indices = @transform_5, window_bounds = array<i64: 16, 1>}, {pipeline_mode = #tpu.pipeline_mode<synchronous>, transform_indices = @transform_6, window_bounds = array<i64: 32, 1>}, {transform_indices = @transform_7, window_bounds = array<i64: 128, 32>}, {transform_indices = @transform_8, window_bounds = array<i64: 1, 128>}, {transform_indices = @transform_9, window_bounds = array<i64: 128, 1>}]} {
    %c0 = arith.constant 0 : index
    %c0_0 = arith.constant 0 : index
    %0 = vector.load %arg1[%c0, %c0_0] : memref<128x16xf32, #tpu.memory_space<vmem>>, vector<128x16xf32>
    %c0_1 = arith.constant 0 : index
    %c0_2 = arith.constant 0 : index
    %1 = vector.load %arg2[%c0_1, %c0_2] : memref<128x32xf32, #tpu.memory_space<vmem>>, vector<128x32xf32>
    %2 = arith.truncf %0 : vector<128x16xf32> to vector<128x16xbf16>
    %c0_3 = arith.constant 0 : index
    %c0_4 = arith.constant 0 : index
    %3 = vector.load %arg3[%c0_3, %c0_4] : memref<16x32xf32, #tpu.memory_space<vmem>>, vector<16x32xf32>
    %4 = arith.truncf %3 : vector<16x32xf32> to vector<16x32xbf16>
    %cst = arith.constant dense<0.000000e+00> : vector<128x32xf32>
    %5 = tpu.matmul %2, %4, %cst {dimension_numbers = #tpu.dot_dimension_numbers<[1], [0], [0], [1], [0, 0, 1, 1], [], []>} : vector<128x16xbf16>, vector<16x32xbf16>, vector<128x32xf32> -> vector<128x32xf32>
    %6 = arith.truncf %5 : vector<128x32xf32> to vector<128x32xbf16>
    %c0_5 = arith.constant 0 : index
    %c0_6 = arith.constant 0 : index
    %7 = vector.load %arg8[%c0_5, %c0_6] : memref<128x32xbf16, #tpu.memory_space<vmem>>, vector<128x32xbf16>
    tpu.vector_store %arg8[%c0_5, %c0_6], %6 {strides = array<i32>} : memref<128x32xbf16, #tpu.memory_space<vmem>>, vector<128x32xbf16>,
    %c0_7 = arith.constant 0 : index
    %c0_8 = arith.constant 0 : index
    %8 = vector.load %arg4[%c0_7, %c0_8] : memref<1x16xf32, #tpu.memory_space<vmem>>, vector<1x16xf32>
    %cst_9 = arith.constant dense<0.000000e+00> : vector<1x128xf32>
    %9 = tpu.matmul %8, %0, %cst_9 {dimension_numbers = #tpu.dot_dimension_numbers<[1], [1], [0], [0], [0, 0, 1, 0], [], []>} : vector<1x16xf32>, vector<128x16xf32>, vector<1x128xf32> -> vector<1x128xf32>
    %c0_10 = arith.constant 0 : index
    %c0_11 = arith.constant 0 : index
    %10 = vector.load %arg5[%c0_10, %c0_11] : memref<1x32xf32, #tpu.memory_space<vmem>>, vector<1x32xf32>
    %cst_12 = arith.constant dense<0.000000e+00> : vector<1x128xf32>
    %11 = tpu.matmul %10, %1, %cst_12 {dimension_numbers = #tpu.dot_dimension_numbers<[1], [1], [0], [0], [0, 0, 1, 0], [], []>} : vector<1x32xf32>, vector<128x32xf32>, vector<1x128xf32> -> vector<1x128xf32>
    %12 = arith.addf %9, %11 : vector<1x128xf32>
    %c0_13 = arith.constant 0 : index
    %c0_14 = arith.constant 0 : index
    %13 = vector.load %arg9[%c0_13, %c0_14] : memref<1x128xf32, #tpu.memory_space<vmem>>, vector<1x128xf32>
    tpu.vector_store %arg9[%c0_13, %c0_14], %12 {strides = array<i32>} : memref<1x128xf32, #tpu.memory_space<vmem>>, vector<1x128xf32>,
    %c0_15 = arith.constant 0 : index
    %c0_16 = arith.constant 0 : index
    %14 = vector.load %arg6[%c0_15, %c0_16] : memref<16x1xf32, #tpu.memory_space<vmem>>, vector<16x1xf32>
    %cst_17 = arith.constant dense<0.000000e+00> : vector<128x1xf32>
    %15 = tpu.matmul %0, %14, %cst_17 {dimension_numbers = #tpu.dot_dimension_numbers<[1], [0], [0], [1], [0, 0, 1, 1], [], []>} : vector<128x16xf32>, vector<16x1xf32>, vector<128x1xf32> -> vector<128x1xf32>
    %c0_18 = arith.constant 0 : index
    %c0_19 = arith.constant 0 : index
    %16 = vector.load %arg7[%c0_18, %c0_19] : memref<32x1xf32, #tpu.memory_space<vmem>>, vector<32x1xf32>
    %cst_20 = arith.constant dense<0.000000e+00> : vector<128x1xf32>
    %17 = tpu.matmul %1, %16, %cst_20 {dimension_numbers = #tpu.dot_dimension_numbers<[1], [0], [0], [1], [0, 0, 1, 1], [], []>} : vector<128x32xf32>, vector<32x1xf32>, vector<128x1xf32> -> vector<128x1xf32>
    %18 = arith.addf %15, %17 : vector<128x1xf32>
    %c0_21 = arith.constant 0 : index
    %c0_22 = arith.constant 0 : index
    %19 = vector.load %arg10[%c0_21, %c0_22] : memref<128x1xf32, #tpu.memory_space<vmem>>, vector<128x1xf32>
    tpu.vector_store %arg10[%c0_21, %c0_22], %18 {strides = array<i32>} : memref<128x1xf32, #tpu.memory_space<vmem>>, vector<128x1xf32>,
    return
  }
  func.func @transform_0(%arg0: i32) -> (i32, i32) {
    %c0_i32 = arith.constant 0 : i32
    %c0_i32_0 = arith.constant 0 : i32
    return %arg0, %c0_i32 : i32, i32
  }
  func.func @transform_1(%arg0: i32) -> (i32, i32) {
    %c0_i32 = arith.constant 0 : i32
    %c0_i32_0 = arith.constant 0 : i32
    return %arg0, %c0_i32 : i32, i32
  }
  func.func @transform_2(%arg0: i32) -> (i32, i32) {
    %c0_i32 = arith.constant 0 : i32
    %c0_i32_0 = arith.constant 0 : i32
    %c0_i32_1 = arith.constant 0 : i32
    return %c0_i32, %c0_i32_0 : i32, i32
  }
  func.func @transform_3(%arg0: i32) -> (i32, i32) {
    %c0_i32 = arith.constant 0 : i32
    %c0_i32_0 = arith.constant 0 : i32
    %c0_i32_1 = arith.constant 0 : i32
    return %c0_i32, %c0_i32_0 : i32, i32
  }
  func.func @transform_4(%arg0: i32) -> (i32, i32) {
    %c0_i32 = arith.constant 0 : i32
    %c0_i32_0 = arith.constant 0 : i32
    %c0_i32_1 = arith.constant 0 : i32
    return %c0_i32, %c0_i32_0 : i32, i32
  }
  func.func @transform_5(%arg0: i32) -> (i32, i32) {
    %c0_i32 = arith.constant 0 : i32
    %c0_i32_0 = arith.constant 0 : i32
    %c0_i32_1 = arith.constant 0 : i32
    return %c0_i32, %c0_i32_0 : i32, i32
  }
  func.func @transform_6(%arg0: i32) -> (i32, i32) {
    %c0_i32 = arith.constant 0 : i32
    %c0_i32_0 = arith.constant 0 : i32
    %c0_i32_1 = arith.constant 0 : i32
    return %c0_i32, %c0_i32_0 : i32, i32
  }
  func.func @transform_7(%arg0: i32) -> (i32, i32) {
    %c0_i32 = arith.constant 0 : i32
    %c0_i32_0 = arith.constant 0 : i32
    return %arg0, %c0_i32 : i32, i32
  }
  func.func @transform_8(%arg0: i32) -> (i32, i32) {
    %c0_i32 = arith.constant 0 : i32
    %c0_i32_0 = arith.constant 0 : i32
    return %c0_i32, %arg0 : i32, i32
  }
  func.func @transform_9(%arg0: i32) -> (i32, i32) {
    %c0_i32 = arith.constant 0 : i32
    %c0_i32_0 = arith.constant 0 : i32
    return %arg0, %c0_i32 : i32, i32
  }
}

</mosaic_0001>

<llo_original>
// kernel: tpu_custom_call.1
$region0: #{tpu_custom_call.1}
  #allocation0 [shape = 'u32[]', space=smem, size = 0x4, offset = 0x4, fixed_abs, tag = 'smem constant byte address 0x4 - core index']
  #allocation1 [shape = 'u32[72,128]{1,0:T(1,128)}', space=vmem, size = 0x9000, scoped, tag = 'internal scratch']
  %s0 = inlined_call_operand.vmem [shape: f32[256,16], index: 0, kind: input, shape index: {}]
  %s1 = inlined_call_operand.vmem [shape: f32[256,32], index: 1, kind: input, shape index: {}]
  %s2 = inlined_call_operand.vmem [shape: f32[16,32], index: 2, kind: input, shape index: {}]
  %s3 = inlined_call_operand.vmem [shape: f32[1,16], index: 3, kind: input, shape index: {}]
  %s4 = inlined_call_operand.vmem [shape: f32[1,32], index: 4, kind: input, shape index: {}]
  %s5 = inlined_call_operand.vmem [shape: f32[16,1], index: 5, kind: input, shape index: {}]
  %s6 = inlined_call_operand.vmem [shape: f32[32,1], index: 6, kind: input, shape index: {}]
  %s7 = inlined_call_operand.vmem [shape: bf16[256,32], index: 7, kind: output, shape index: {0}]
  %s8 = inlined_call_operand.hbm [shape: f32[1,256], index: 8, kind: output, shape index: {1}]
  %s9 = inlined_call_operand.vmem [shape: f32[256,1], index: 9, kind: output, shape index: {2}]
  %10 = xla_tuple %s7, %s8, %s9
  %s11 = sld [smem:[#allocation0]]
  $region77: #{tpu_custom_call.1} parent=0
    _
  %s13 = ssub.s32 1, %s11
  %s14 = scalar_select 0, %s13, %s11
  $region1: #{tpu_custom_call.1} parent=0
    #allocation2 [shape = 'u8[1024]{0}', space=vmem, size = 0x400, scoped, tag = 'output window, operand 1']
    #allocation3 [shape = 's32[2]{0}', space=sflag, size = 0x8, scoped, tag = 'scoped memory for tpu_custom_call.1']
    %15 = vsyncpa [#allocation3], 0
    %s16 = scalar_lea.sflag [#allocation3], 1
    %17 = vsyncpa %s16, 0
    loop: start=0, step=1, limit=4
    $region2: #{tpu_custom_call.1} parent=1 // loop_pre_header
      _
    $region3: #{tpu_custom_call.1} parent=1 // loop_header
      %s19 = sphi 0, %s23
      %p20 = scmp.ge.s32.totalorder %s19, 4
      %s29 = sphi 0, %s31
      %s32 = sphi 0, %s29
      %s33 = sphi 0, %s32
      %s49 = sphi 0, %s33
      %s55 = sphi 0, %s57
      %s58 = sphi 0, %s55
      %s59 = sphi 0, %s58
      %s75 = sphi 0, %s59
      %s79 = sphi 0, %s79
      %s81 = sphi 0, %s79
      %s82 = sphi 0, %s81
      %s96 = sphi 0, %s82
      %s100 = sphi 0, %s100
      %s102 = sphi 0, %s100
      %s103 = sphi 0, %s102
      %s117 = sphi 0, %s103
      %s121 = sphi 0, %s121
      %s123 = sphi 0, %s121
      %s124 = sphi 0, %s123
      %s138 = sphi 0, %s124
      %s142 = sphi 0, %s142
      %s144 = sphi 0, %s142
      %s145 = sphi 0, %s144
      %s159 = sphi 0, %s145
      %s163 = sphi 0, %s163
      %s165 = sphi 0, %s163
      %s166 = sphi 0, %s165
      %s180 = sphi 0, %s166
      %s186 = sphi 0, %s188
      %s189 = sphi 0, %s186
      %s190 = sphi 0, %s189
      %s206 = sphi 0, %s190
      %s212 = sphi 0, %s214
      %s215 = sphi 0, %s212
      %s216 = sphi 0, %s215
      %s232 = sphi 0, %s216
      %s238 = sphi 0, %s240
      %s241 = sphi 0, %s238
      %s242 = sphi 0, %s241
      %s258 = sphi 0, %s242
    $region4: #{tpu_custom_call.1} parent=1 // loop_header_branch
      %22 = sbr.rel (%p20) target = $region8
    $region5: #{tpu_custom_call.1} parent=1 // loop_body
      %s24 = ssub.s32 %s19, 1
      %s25 = ssub.s32 %s19, 2
      %s26 = sadd.s32 %s19, 1
      %s27 = ssub.s32 %s19, %s26
      %p28 = scmp.eq.s32.totalorder %s27, 0
      %s30 = sadd.s32 %s29, 1
      %s31 = scalar_select %p28, %s29, %s30
      %p34 = pneg %p28
      %p35 = scmp.eq.s32.totalorder %s19, 1
      %p36 = por %p34, %p35
      %p37 = scmp.ne.s32.totalorder %s29, %s32
      %p38 = scmp.eq.s32.totalorder %s19, 0
      %p39 = por %p37, %p38
      %p40 = scmp.ne.s32.totalorder %s29, %s32
      %p41 = scmp.eq.s32.totalorder %s24, 1
      %p42 = por %p40, %p41
      %p43 = scmp.ne.s32.totalorder %s32, %s33
      %p44 = scmp.eq.s32.totalorder %s24, 0
      %p45 = por %p43, %p44
      %p46 = scmp.ne.s32.totalorder %s32, %s33
      %p47 = scmp.eq.s32.totalorder %s25, 1
      %p48 = por %p46, %p47
      %p50 = scmp.ne.s32.totalorder %s33, %s49
      %p51 = scmp.eq.s32.totalorder %s25, 0
      %p52 = por %p50, %p51
      %s53 = ssub.s32 %s19, %s26
      %p54 = scmp.eq.s32.totalorder %s53, 0
      %s56 = sadd.s32 %s55, 1
      %s57 = scalar_select %p54, %s55, %s56
      %p60 = pneg %p54
      %p61 = scmp.eq.s32.totalorder %s19, 1
      %p62 = por %p60, %p61
      %p63 = scmp.ne.s32.totalorder %s55, %s58
      %p64 = scmp.eq.s32.totalorder %s19, 0
      %p65 = por %p63, %p64
      %p66 = scmp.ne.s32.totalorder %s55, %s58
      %p67 = scmp.eq.s32.totalorder %s24, 1
      %p68 = por %p66, %p67
      %p69 = scmp.ne.s32.totalorder %s58, %s59
      %p70 = scmp.eq.s32.totalorder %s24, 0
      %p71 = por %p69, %p70
      %p72 = scmp.ne.s32.totalorder %s58, %s59
      %p73 = scmp.eq.s32.totalorder %s25, 1
      %p74 = por %p72, %p73
      %p76 = scmp.ne.s32.totalorder %s59, %s75
      %p77 = scmp.eq.s32.totalorder %s25, 0
      %p78 = por %p76, %p77
      %s80 = sadd.s32 %s79, 1
      %p83 = scmp.eq.s32.totalorder %s19, 1
      %p84 = scmp.ne.s32.totalorder %s79, %s81
      %p85 = scmp.eq.s32.totalorder %s19, 0
      %p86 = por %p84, %p85
      %p87 = scmp.ne.s32.totalorder %s79, %s81
      %p88 = scmp.eq.s32.totalorder %s24, 1
      %p89 = por %p87, %p88
      %p90 = scmp.ne.s32.totalorder %s81, %s82
      %p91 = scmp.eq.s32.totalorder %s24, 0
      %p92 = por %p90, %p91
      %p93 = scmp.ne.s32.totalorder %s81, %s82
      %p94 = scmp.eq.s32.totalorder %s25, 1
      %p95 = por %p93, %p94
      %p97 = scmp.ne.s32.totalorder %s82, %s96
      %p98 = scmp.eq.s32.totalorder %s25, 0
      %p99 = por %p97, %p98
      %s101 = sadd.s32 %s100, 1
      %p104 = scmp.eq.s32.totalorder %s19, 1
      %p105 = scmp.ne.s32.totalorder %s100, %s102
      %p106 = scmp.eq.s32.totalorder %s19, 0
      %p107 = por %p105, %p106
      %p108 = scmp.ne.s32.totalorder %s100, %s102
      %p109 = scmp.eq.s32.totalorder %s24, 1
      %p110 = por %p108, %p109
      %p111 = scmp.ne.s32.totalorder %s102, %s103
      %p112 = scmp.eq.s32.totalorder %s24, 0
      %p113 = por %p111, %p112
      %p114 = scmp.ne.s32.totalorder %s102, %s103
      %p115 = scmp.eq.s32.totalorder %s25, 1
      %p116 = por %p114, %p115
      %p118 = scmp.ne.s32.totalorder %s103, %s117
      %p119 = scmp.eq.s32.totalorder %s25, 0
      %p120 = por %p118, %p119
      %s122 = sadd.s32 %s121, 1
      %p125 = scmp.eq.s32.totalorder %s19, 1
      %p126 = scmp.ne.s32.totalorder %s121, %s123
      %p127 = scmp.eq.s32.totalorder %s19, 0
      %p128 = por %p126, %p127
      %p129 = scmp.ne.s32.totalorder %s121, %s123
      %p130 = scmp.eq.s32.totalorder %s24, 1
      %p131 = por %p129, %p130
      %p132 = scmp.ne.s32.totalorder %s123, %s124
      %p133 = scmp.eq.s32.totalorder %s24, 0
      %p134 = por %p132, %p133
      %p135 = scmp.ne.s32.totalorder %s123, %s124
      %p136 = scmp.eq.s32.totalorder %s25, 1
      %p137 = por %p135, %p136
      %p139 = scmp.ne.s32.totalorder %s124, %s138
      %p140 = scmp.eq.s32.totalorder %s25, 0
      %p141 = por %p139, %p140
      %s143 = sadd.s32 %s142, 1
      %p146 = scmp.eq.s32.totalorder %s19, 1
      %p147 = scmp.ne.s32.totalorder %s142, %s144
      %p148 = scmp.eq.s32.totalorder %s19, 0
      %p149 = por %p147, %p148
      %p150 = scmp.ne.s32.totalorder %s142, %s144
      %p151 = scmp.eq.s32.totalorder %s24, 1
      %p152 = por %p150, %p151
      %p153 = scmp.ne.s32.totalorder %s144, %s145
      %p154 = scmp.eq.s32.totalorder %s24, 0
      %p155 = por %p153, %p154
      %p156 = scmp.ne.s32.totalorder %s144, %s145
      %p157 = scmp.eq.s32.totalorder %s25, 1
      %p158 = por %p156, %p157
      %p160 = scmp.ne.s32.totalorder %s145, %s159
      %p161 = scmp.eq.s32.totalorder %s25, 0
      %p162 = por %p160, %p161
      %s164 = sadd.s32 %s163, 1
      %p167 = scmp.eq.s32.totalorder %s19, 1
      %p168 = scmp.ne.s32.totalorder %s163, %s165
      %p169 = scmp.eq.s32.totalorder %s19, 0
      %p170 = por %p168, %p169
      %p171 = scmp.ne.s32.totalorder %s163, %s165
      %p172 = scmp.eq.s32.totalorder %s24, 1
      %p173 = por %p171, %p172
      %p174 = scmp.ne.s32.totalorder %s165, %s166
      %p175 = scmp.eq.s32.totalorder %s24, 0
      %p176 = por %p174, %p175
      %p177 = scmp.ne.s32.totalorder %s165, %s166
      %p178 = scmp.eq.s32.totalorder %s25, 1
      %p179 = por %p177, %p178
      %p181 = scmp.ne.s32.totalorder %s166, %s180
      %p182 = scmp.eq.s32.totalorder %s25, 0
      %p183 = por %p181, %p182
      %s184 = ssub.s32 %s19, %s26
      %p185 = scmp.eq.s32.totalorder %s184, 0
      %s187 = sadd.s32 %s186, 1
      %s188 = scalar_select %p185, %s186, %s187
      %p191 = pneg %p185
      %p192 = scmp.eq.s32.totalorder %s19, 1
      %p193 = por %p191, %p192
      %p194 = scmp.ne.s32.totalorder %s186, %s189
      %p195 = scmp.eq.s32.totalorder %s19, 0
      %p196 = por %p194, %p195
      %p197 = scmp.ne.s32.totalorder %s186, %s189
      %p198 = scmp.eq.s32.totalorder %s24, 1
      %p199 = por %p197, %p198
      %p200 = scmp.ne.s32.totalorder %s189, %s190
      %p201 = scmp.eq.s32.totalorder %s24, 0
      %p202 = por %p200, %p201
      %p203 = scmp.ne.s32.totalorder %s189, %s190
      %p204 = scmp.eq.s32.totalorder %s25, 1
      %p205 = por %p203, %p204
      %p207 = scmp.ne.s32.totalorder %s190, %s206
      %p208 = scmp.eq.s32.totalorder %s25, 0
      %p209 = por %p207, %p208
      %s210 = ssub.s32 %s19, %s26
      %p211 = scmp.eq.s32.totalorder %s210, 0
      %s213 = sadd.s32 %s212, 1
      %s214 = scalar_select %p211, %s212, %s213
      %p217 = pneg %p211
      %p218 = scmp.eq.s32.totalorder %s19, 1
      %p219 = por %p217, %p218
      %p220 = scmp.ne.s32.totalorder %s212, %s215
      %p221 = scmp.eq.s32.totalorder %s19, 0
      %p222 = por %p220, %p221
      %p223 = scmp.ne.s32.totalorder %s212, %s215
      %p224 = scmp.eq.s32.totalorder %s24, 1
      %p225 = por %p223, %p224
      %p226 = scmp.ne.s32.totalorder %s215, %s216
      %p227 = scmp.eq.s32.totalorder %s24, 0
      %p228 = por %p226, %p227
      %p229 = scmp.ne.s32.totalorder %s215, %s216
      %p230 = scmp.eq.s32.totalorder %s25, 1
      %p231 = por %p229, %p230
      %p233 = scmp.ne.s32.totalorder %s216, %s232
      %p234 = scmp.eq.s32.totalorder %s25, 0
      %p235 = por %p233, %p234
      %s236 = ssub.s32 %s19, %s26
      %p237 = scmp.eq.s32.totalorder %s236, 0
      %s239 = sadd.s32 %s238, 1
      %s240 = scalar_select %p237, %s238, %s239
      %p243 = pneg %p237
      %p244 = scmp.eq.s32.totalorder %s19, 1
      %p245 = por %p243, %p244
      %p246 = scmp.ne.s32.totalorder %s238, %s241
      %p247 = scmp.eq.s32.totalorder %s19, 0
      %p248 = por %p246, %p247
      %p249 = scmp.ne.s32.totalorder %s238, %s241
      %p250 = scmp.eq.s32.totalorder %s24, 1
      %p251 = por %p249, %p250
      %p252 = scmp.ne.s32.totalorder %s241, %s242
      %p253 = scmp.eq.s32.totalorder %s24, 0
      %p254 = por %p252, %p253
      %p255 = scmp.ne.s32.totalorder %s241, %s242
      %p256 = scmp.eq.s32.totalorder %s25, 1
      %p257 = por %p255, %p256
      %p259 = scmp.ne.s32.totalorder %s242, %s258
      %p260 = scmp.eq.s32.totalorder %s25, 0
      %p261 = por %p259, %p260
      %p262 = scmp.le.s32.totalorder 1, %s19
      %p263 = scmp.lt.s32.totalorder %s19, 3
      %p264 = pnand %p262, %p263
      %p265 = pneg %p264
      // Predicated region
      $region9: #{tpu_custom_call.1} parent=5 // pred_check
        _
      $region10: #{tpu_custom_call.1} parent=5 // pred_check_branch
        %267 = sbr.rel (%p264) target = $region12
      $region11: #{tpu_custom_call.1} parent=5 // pred_region
        %s268 = ssub.s32 %s19, 1
        // Predicated region
        $region13: #{tpu_custom_call.1} parent=11 // pred_check
          %p269 = pneg %p92
        $region14: #{tpu_custom_call.1} parent=11 // pred_check_branch
          %271 = sbr.rel (%p269) target = $region16
        $region15: #{tpu_custom_call.1} parent=11 // pred_region
          _
        $region16: #{tpu_custom_call.1} parent=11 // pred_fallthru
          _
        // Predicated region
        $region17: #{tpu_custom_call.1} parent=11 // pred_check
          %p272 = pneg %p113
        $region18: #{tpu_custom_call.1} parent=11 // pred_check_branch
          %274 = sbr.rel (%p272) target = $region20
        $region19: #{tpu_custom_call.1} parent=11 // pred_region
          _
        $region20: #{tpu_custom_call.1} parent=11 // pred_fallthru
          _
        // Predicated region
        $region21: #{tpu_custom_call.1} parent=11 // pred_check
          %p275 = pneg %p134
        $region22: #{tpu_custom_call.1} parent=11 // pred_check_branch
          %277 = sbr.rel (%p275) target = $region24
        $region23: #{tpu_custom_call.1} parent=11 // pred_region
          _
        $region24: #{tpu_custom_call.1} parent=11 // pred_fallthru
          _
        // Predicated region
        $region25: #{tpu_custom_call.1} parent=11 // pred_check
          %p278 = pneg %p155
        $region26: #{tpu_custom_call.1} parent=11 // pred_check_branch
          %280 = sbr.rel (%p278) target = $region28
        $region27: #{tpu_custom_call.1} parent=11 // pred_region
          _
        $region28: #{tpu_custom_call.1} parent=11 // pred_fallthru
          _
        // Predicated region
        $region29: #{tpu_custom_call.1} parent=11 // pred_check
          %p281 = pneg %p176
        $region30: #{tpu_custom_call.1} parent=11 // pred_check_branch
          %283 = sbr.rel (%p281) target = $region32
        $region31: #{tpu_custom_call.1} parent=11 // pred_region
          _
        $region32: #{tpu_custom_call.1} parent=11 // pred_fallthru
          _
      $region12: #{tpu_custom_call.1} parent=5 // pred_fallthru
        _
      %p284 = scmp.lt.s32.totalorder %s19, 2
      // Predicated region
      $region33: #{tpu_custom_call.1} parent=5 // pred_check
        %p285 = pneg %p284
      $region34: #{tpu_custom_call.1} parent=5 // pred_check_branch
        %287 = sbr.rel (%p285) target = $region36
      $region35: #{tpu_custom_call.1} parent=5 // pred_region
        // Predicated region
        $region37: #{tpu_custom_call.1} parent=35 // pred_check
          %p288 = pneg %p39
        $region38: #{tpu_custom_call.1} parent=35 // pred_check_branch
          %290 = sbr.rel (%p288) target = $region40
        $region39: #{tpu_custom_call.1} parent=35 // pred_region
          %s291 = smul.u32 16, %s19
          %p292 = scmp.lt.s32.totalorder %s291, 31
          %s293 = scalar_select %p292, %s291, 31
          %s294 = smul.addr %s293, 8
          %s295 = scalar_lea.vmem %s0, %s294
          %s296 = smul.u32 16, %s19
        $region40: #{tpu_custom_call.1} parent=35 // pred_fallthru
          _
        // Predicated region
        $region41: #{tpu_custom_call.1} parent=35 // pred_check
          %p297 = pneg %p65
        $region42: #{tpu_custom_call.1} parent=35 // pred_check_branch
          %299 = sbr.rel (%p297) target = $region44
        $region43: #{tpu_custom_call.1} parent=35 // pred_region
          %s300 = smul.u32 16, %s19
          %p301 = scmp.lt.s32.totalorder %s300, 31
          %s302 = scalar_select %p301, %s300, 31
          %s303 = smul.addr %s302, 8
          %s304 = scalar_lea.vmem %s1, %s303
          %s305 = smul.u32 16, %s19
        $region44: #{tpu_custom_call.1} parent=35 // pred_fallthru
          _
      $region36: #{tpu_custom_call.1} parent=5 // pred_fallthru
        _
      %p306 = scmp.le.s32.totalorder 1, %s19
      %p307 = scmp.lt.s32.totalorder %s19, 3
      %p308 = pnand %p306, %p307
      %p309 = pneg %p308
      // Predicated region
      $region45: #{tpu_custom_call.1} parent=5 // pred_check
        _
      $region46: #{tpu_custom_call.1} parent=5 // pred_check_branch
        %311 = sbr.rel (%p308) target = $region48
      $region47: #{tpu_custom_call.1} parent=5 // pred_region
        %s312 = ssub.s32 %s19, 1
        %s313 = smul.u32 16, %s24
        %p314 = scmp.lt.s32.totalorder %s313, 31
        %s315 = scalar_select %p314, %s313, 31
        %s316 = smul.addr %s315, 8
        %s317 = scalar_lea.vmem %s0, %s316
        %p318 = pneg %p45
        %p319 = pneg %p42
        %s320 = smul.u32 16, %s24
        %p321 = scmp.lt.s32.totalorder %s320, 31
        %s322 = scalar_select %p321, %s320, 31
        %s323 = smul.addr %s322, 8
        %s324 = scalar_lea.vmem %s1, %s323
        %p325 = pneg %p71
        %p326 = pneg %p68
        %p327 = pneg %p92
        %p328 = pneg %p89
        %p329 = pneg %p113
        %p330 = pneg %p110
        %p331 = pneg %p134
        %p332 = pneg %p131
        %p333 = pneg %p155
        %p334 = pneg %p152
        %p335 = pneg %p176
        %p336 = pneg %p173
        %p337 = pneg %p202
        %p338 = pneg %p199
        %s339 = smul.u32 16, %s24
        %p340 = scmp.lt.s32.totalorder %s339, 31
        %s341 = scalar_select %p340, %s339, 31
        %s342 = smul.addr %s341, 4
        %s343 = scalar_lea.vmem %s7, %s342
        %p344 = pneg %p228
        %p345 = pneg %p225
        %s346 = sand.u32 %s215, 1
        %s347 = scalar_lea.sflag [#allocation3], %s346
        %s348 = sand.u32 %s215, 1
        %s349 = scalar_lea.vmem [#allocation2], %s348
        %p350 = pneg %p254
        %p351 = pneg %p251
        %s352 = smul.u32 16, %s24
        %p353 = scmp.lt.s32.totalorder %s352, 31
        %s354 = scalar_select %p353, %s352, 31
        %s355 = smul.addr %s354, 8
        %s356 = scalar_lea.vmem %s9, %s355
        %s357 = smul.u32 16, %s24
        %p358 = scmp.lt.s32.totalorder %s357, 31
        %s359 = scalar_select %p358, %s357, 31
        %s360 = smul.addr %s359, 8
        %s361 = scalar_lea.vmem %s0, %s360
        %s362 = smul.u32 16, %s24
        %s363 = smul.u32 16, %s24
        %p364 = scmp.lt.s32.totalorder %s363, 31
        %s365 = scalar_select %p364, %s363, 31
        %s366 = smul.addr %s365, 8
        %s367 = scalar_lea.vmem %s1, %s366
        %s368 = smul.u32 16, %s24
        %s369 = smul.u32 16, %s24
        %p370 = scmp.lt.s32.totalorder %s369, 31
        %s371 = scalar_select %p370, %s369, 31
        %s372 = smul.addr %s371, 4
        %s373 = scalar_lea.vmem %s7, %s372
        %s374 = smul.u32 16, %s24
        %s375 = smul.u32 16, %s24
        %p376 = scmp.lt.s32.totalorder %s375, 31
        %s377 = scalar_select %p376, %s375, 31
        %s378 = smul.addr %s377, 8
        %s379 = scalar_lea.vmem %s9, %s378
        %s380 = smul.u32 16, %s24
        %v382 = vld [vmem:[%s361] sm:$0xff]
        %v383 = vld [vmem:[%s361 + $0x8] sm:$0xff]
        %v384 = vld [vmem:[%s361 + $0x10] sm:$0xff]
        %v385 = vld [vmem:[%s361 + $0x18] sm:$0xff]
        %v386 = vld [vmem:[%s361 + $0x20] sm:$0xff]
        %v387 = vld [vmem:[%s361 + $0x28] sm:$0xff]
        %v388 = vld [vmem:[%s361 + $0x30] sm:$0xff]
        %v389 = vld [vmem:[%s361 + $0x38] sm:$0xff]
        %v390 = vld [vmem:[%s361 + $0x40] sm:$0xff]
        %v391 = vld [vmem:[%s361 + $0x48] sm:$0xff]
        %v392 = vld [vmem:[%s361 + $0x50] sm:$0xff]
        %v393 = vld [vmem:[%s361 + $0x58] sm:$0xff]
        %v394 = vld [vmem:[%s361 + $0x60] sm:$0xff]
        %v395 = vld [vmem:[%s361 + $0x68] sm:$0xff]
        %v396 = vld [vmem:[%s361 + $0x70] sm:$0xff]
        %v397 = vld [vmem:[%s361 + $0x78] sm:$0xff]
        %v398 = vld [vmem:[%s367] sm:$0xff]
        %v399 = vld [vmem:[%s367 + $0x8] sm:$0xff]
        %v400 = vld [vmem:[%s367 + $0x10] sm:$0xff]
        %v401 = vld [vmem:[%s367 + $0x18] sm:$0xff]
        %v402 = vld [vmem:[%s367 + $0x20] sm:$0xff]
        %v403 = vld [vmem:[%s367 + $0x28] sm:$0xff]
        %v404 = vld [vmem:[%s367 + $0x30] sm:$0xff]
        %v405 = vld [vmem:[%s367 + $0x38] sm:$0xff]
        %v406 = vld [vmem:[%s367 + $0x40] sm:$0xff]
        %v407 = vld [vmem:[%s367 + $0x48] sm:$0xff]
        %v408 = vld [vmem:[%s367 + $0x50] sm:$0xff]
        %v409 = vld [vmem:[%s367 + $0x58] sm:$0xff]
        %v410 = vld [vmem:[%s367 + $0x60] sm:$0xff]
        %v411 = vld [vmem:[%s367 + $0x68] sm:$0xff]
        %v412 = vld [vmem:[%s367 + $0x70] sm:$0xff]
        %v413 = vld [vmem:[%s367 + $0x78] sm:$0xff]
        %v414 = vpack.c.bf16 %v383, %v382
        %v415 = vpack.c.bf16 %v385, %v384
        %v416 = vpack.c.bf16 %v387, %v386
        %v417 = vpack.c.bf16 %v389, %v388
        %v418 = vpack.c.bf16 %v391, %v390
        %v419 = vpack.c.bf16 %v393, %v392
        %v420 = vpack.c.bf16 %v395, %v394
        %v421 = vpack.c.bf16 %v397, %v396
        %v422 = vld [vmem:[%s2] sm:$0xff]
        %v423 = vld [vmem:[%s2 + $0x8] sm:$0xff]
        %v424 = vpack.c.bf16 %v423, %v422
        %vm425 = vcmask 130048
        %v427 = vsel %vm425, %v414, 0
        %v430 = vsel %vm425, %v415, 0
        %v433 = vsel %vm425, %v416, 0
        %v436 = vsel %vm425, %v417, 0
        %v439 = vsel %vm425, %v418, 0
        %v442 = vsel %vm425, %v419, 0
        %v445 = vsel %vm425, %v420, 0
        %v448 = vsel %vm425, %v421, 0
        %450 = vmatpush.bf16.msra.mxu0 0
        %451 = vmatpush.bf16.msra.mxu0 0
        %452 = vmatpush.bf16.msra.mxu0 0
        %453 = vmatpush.bf16.msra.mxu0 0
        %454 = vmatpush.bf16.msra.mxu0 0
        %455 = vmatpush.bf16.msra.mxu0 0
        %456 = vmatpush.bf16.msra.mxu0 0
        %457 = vmatpush.bf16.msra.mxu0 %v424
        %458 = vmatmul.bf16.gmra.mxu0 %v427
        %v459 = vpop.f32.mrf.mxu0
        %v460 = vadd.f32 0.0, %v459
        %v461 = vpop.f32.mrf.mxu0
        %v462 = vadd.f32 0.0, %v461
        %463 = vmatmul.bf16.gmra.mxu0 %v430
        %v464 = vpop.f32.mrf.mxu0
        %v465 = vadd.f32 0.0, %v464
        %v466 = vpop.f32.mrf.mxu0
        %v467 = vadd.f32 0.0, %v466
        %468 = vmatmul.bf16.gmra.mxu0 %v433
        %v469 = vpop.f32.mrf.mxu0
        %v470 = vadd.f32 0.0, %v469
        %v471 = vpop.f32.mrf.mxu0
        %v472 = vadd.f32 0.0, %v471
        %473 = vmatmul.bf16.gmra.mxu0 %v436
        %v474 = vpop.f32.mrf.mxu0
        %v475 = vadd.f32 0.0, %v474
        %v476 = vpop.f32.mrf.mxu0
        %v477 = vadd.f32 0.0, %v476
        %478 = vmatmul.bf16.gmra.mxu0 %v439
        %v479 = vpop.f32.mrf.mxu0
        %v480 = vadd.f32 0.0, %v479
        %v481 = vpop.f32.mrf.mxu0
        %v482 = vadd.f32 0.0, %v481
        %483 = vmatmul.bf16.gmra.mxu0 %v442
        %v484 = vpop.f32.mrf.mxu0
        %v485 = vadd.f32 0.0, %v484
        %v486 = vpop.f32.mrf.mxu0
        %v487 = vadd.f32 0.0, %v486
        %488 = vmatmul.bf16.gmra.mxu0 %v445
        %v489 = vpop.f32.mrf.mxu0
        %v490 = vadd.f32 0.0, %v489
        %v491 = vpop.f32.mrf.mxu0
        %v492 = vadd.f32 0.0, %v491
        %493 = vmatmul.bf16.gmra.mxu0 %v448
        %v494 = vpop.f32.mrf.mxu0
        %v495 = vadd.f32 0.0, %v494
        %v496 = vpop.f32.mrf.mxu0
        %v497 = vadd.f32 0.0, %v496
        %498 = vdwg.mxu0
        %v499 = vpack.c.bf16 %v460, %v460
        %v500 = vpack.c.bf16 %v462, %v462
        %v501 = vpack.c.bf16 %v465, %v465
        %v502 = vpack.c.bf16 %v467, %v467
        %v503 = vpack.c.bf16 %v470, %v470
        %v504 = vpack.c.bf16 %v472, %v472
        %v505 = vpack.c.bf16 %v475, %v475
        %v506 = vpack.c.bf16 %v477, %v477
        %v507 = vpack.c.bf16 %v480, %v480
        %v508 = vpack.c.bf16 %v482, %v482
        %v509 = vpack.c.bf16 %v485, %v485
        %v510 = vpack.c.bf16 %v487, %v487
        %v511 = vpack.c.bf16 %v490, %v490
        %v512 = vpack.c.bf16 %v492, %v492
        %v513 = vpack.c.bf16 %v495, %v495
        %v514 = vpack.c.bf16 %v497, %v497
        %vm515 = vcmask 257024
        %516 = vst.msk [vmem:[%s373] sm:$0xf] %vm515, %v499
        %517 = vst.msk [vmem:[%s373 + $0x4] sm:$0xf] %vm515, %v500
        %518 = vst.msk [vmem:[%s373 + $0x8] sm:$0xf] %vm515, %v501
        %519 = vst.msk [vmem:[%s373 + $0xc] sm:$0xf] %vm515, %v502
        %520 = vst.msk [vmem:[%s373 + $0x10] sm:$0xf] %vm515, %v503
        %521 = vst.msk [vmem:[%s373 + $0x14] sm:$0xf] %vm515, %v504
        %522 = vst.msk [vmem:[%s373 + $0x18] sm:$0xf] %vm515, %v505
        %523 = vst.msk [vmem:[%s373 + $0x1c] sm:$0xf] %vm515, %v506
        %524 = vst.msk [vmem:[%s373 + $0x20] sm:$0xf] %vm515, %v507
        %525 = vst.msk [vmem:[%s373 + $0x24] sm:$0xf] %vm515, %v508
        %526 = vst.msk [vmem:[%s373 + $0x28] sm:$0xf] %vm515, %v509
        %527 = vst.msk [vmem:[%s373 + $0x2c] sm:$0xf] %vm515, %v510
        %528 = vst.msk [vmem:[%s373 + $0x30] sm:$0xf] %vm515, %v511
        %529 = vst.msk [vmem:[%s373 + $0x34] sm:$0xf] %vm515, %v512
        %530 = vst.msk [vmem:[%s373 + $0x38] sm:$0xf] %vm515, %v513
        %531 = vst.msk [vmem:[%s373 + $0x3c] sm:$0xf] %vm515, %v514
        %v532 = vld [vmem:[%s3] sm:$0x1]
        %v533 = vld [vmem:[%s4] sm:$0x1]
        %vm534 = vcmask 261120
        %v536 = vsel %vm534, %v533, 0
        %v539 = vsel %vm534, %v398, 0
        %v542 = vsel %vm534, %v399, 0
        %v545 = vsel %vm534, %v400, 0
        %v548 = vsel %vm534, %v401, 0
        %v551 = vsel %vm534, %v402, 0
        %v554 = vsel %vm534, %v403, 0
        %v557 = vsel %vm534, %v404, 0
        %v560 = vsel %vm534, %v405, 0
        %v563 = vsel %vm534, %v406, 0
        %v566 = vsel %vm534, %v407, 0
        %v569 = vsel %vm534, %v408, 0
        %v572 = vsel %vm534, %v409, 0
        %v575 = vsel %vm534, %v410, 0
        %v578 = vsel %vm534, %v411, 0
        %v581 = vsel %vm534, %v412, 0
        %v584 = vsel %vm534, %v413, 0
        %586 = vmatpush.xpose.msra.mxu0 %v584
        %587 = vmatpush.xpose.msra.mxu0 %v581
        %588 = vmatpush.xpose.msra.mxu0 %v578
        %589 = vmatpush.xpose.msra.mxu0 %v575
        %590 = vmatpush.xpose.msra.mxu0 %v572
        %591 = vmatpush.xpose.msra.mxu0 %v569
        %592 = vmatpush.xpose.msra.mxu0 %v566
        %593 = vmatpush.xpose.msra.mxu0 %v563
        %594 = vmatpush.xpose.msra.mxu0 %v560
        %595 = vmatpush.xpose.msra.mxu0 %v557
        %596 = vmatpush.xpose.msra.mxu0 %v554
        %597 = vmatpush.xpose.msra.mxu0 %v551
        %598 = vmatpush.xpose.msra.mxu0 %v548
        %599 = vmatpush.xpose.msra.mxu0 %v545
        %600 = vmatpush.xpose.msra.mxu0 %v542
        %601 = vmatpush.xpose.msra.mxu0 %v539
        %602 = vmatmul.f32.gmra.mxu0 %v536
        %v603 = vpop.f32.mrf.mxu0
        %v604 = vadd.f32 0.0, %v603
        %605 = vdwg.mxu0
        %v607 = vsel %vm425, %v532, 0
        %v610 = vsel %vm425, %v382, 0
        %v613 = vsel %vm425, %v383, 0
        %v616 = vsel %vm425, %v384, 0
        %v619 = vsel %vm425, %v385, 0
        %v622 = vsel %vm425, %v386, 0
        %v625 = vsel %vm425, %v387, 0
        %v628 = vsel %vm425, %v388, 0
        %v631 = vsel %vm425, %v389, 0
        %v634 = vsel %vm425, %v390, 0
        %v637 = vsel %vm425, %v391, 0
        %v640 = vsel %vm425, %v392, 0
        %v643 = vsel %vm425, %v393, 0
        %v646 = vsel %vm425, %v394, 0
        %v649 = vsel %vm425, %v395, 0
        %v652 = vsel %vm425, %v396, 0
        %v655 = vsel %vm425, %v397, 0
        %657 = vmatpush.xpose.msra.mxu0 %v655
        %658 = vmatpush.xpose.msra.mxu0 %v652
        %659 = vmatpush.xpose.msra.mxu0 %v649
        %660 = vmatpush.xpose.msra.mxu0 %v646
        %661 = vmatpush.xpose.msra.mxu0 %v643
        %662 = vmatpush.xpose.msra.mxu0 %v640
        %663 = vmatpush.xpose.msra.mxu0 %v637
        %664 = vmatpush.xpose.msra.mxu0 %v634
        %665 = vmatpush.xpose.msra.mxu0 %v631
        %666 = vmatpush.xpose.msra.mxu0 %v628
        %667 = vmatpush.xpose.msra.mxu0 %v625
        %668 = vmatpush.xpose.msra.mxu0 %v622
        %669 = vmatpush.xpose.msra.mxu0 %v619
        %670 = vmatpush.xpose.msra.mxu0 %v616
        %671 = vmatpush.xpose.msra.mxu0 %v613
        %672 = vmatpush.xpose.msra.mxu0 %v610
        %673 = vmatmul.f32.gmra.mxu0 %v607
        %v674 = vpop.f32.mrf.mxu0
        %v675 = vadd.f32 %v604, %v674
        %676 = vdwg.mxu0
        %677 = vst [vmem:[%s349] sm:$0x1] %v675
        %v678 = vld [vmem:[%s5] sm:$0xff]
        %v679 = vld [vmem:[%s5 + $0x8] sm:$0xff]
        %v680 = vld [vmem:[%s6] sm:$0xff]
        %v681 = vld [vmem:[%s6 + $0x8] sm:$0xff]
        %v682 = vld [vmem:[%s6 + $0x10] sm:$0xff]
        %v683 = vld [vmem:[%s6 + $0x18] sm:$0xff]
        %684 = vmatpush.msra.mxu0 0.0
        %685 = vmatpush.msra.mxu0 0.0
        %686 = vmatpush.msra.mxu0 0.0
        %687 = vmatpush.msra.mxu0 0.0
        %688 = vmatpush.msra.mxu0 0.0
        %689 = vmatpush.msra.mxu0 0.0
        %690 = vmatpush.msra.mxu0 0.0
        %691 = vmatpush.msra.mxu0 0.0
        %692 = vmatpush.msra.mxu0 0.0
        %693 = vmatpush.msra.mxu0 0.0
        %694 = vmatpush.msra.mxu0 0.0
        %695 = vmatpush.msra.mxu0 0.0
        %696 = vmatpush.msra.mxu0 %v683
        %697 = vmatpush.msra.mxu0 %v682
        %698 = vmatpush.msra.mxu0 %v681
        %699 = vmatpush.msra.mxu0 %v680
        %700 = vmatmul.f32.gmra.mxu0 %v539
        %v701 = vpop.f32.mrf.mxu0
        %v702 = vadd.f32 0.0, %v701
        %703 = vmatmul.f32.gmra.mxu0 %v542
        %v704 = vpop.f32.mrf.mxu0
        %v705 = vadd.f32 0.0, %v704
        %706 = vmatmul.f32.gmra.mxu0 %v545
        %v707 = vpop.f32.mrf.mxu0
        %v708 = vadd.f32 0.0, %v707
        %709 = vmatmul.f32.gmra.mxu0 %v548
        %v710 = vpop.f32.mrf.mxu0
        %v711 = vadd.f32 0.0, %v710
        %712 = vmatmul.f32.gmra.mxu0 %v551
        %v713 = vpop.f32.mrf.mxu0
        %v714 = vadd.f32 0.0, %v713
        %715 = vmatmul.f32.gmra.mxu0 %v554
        %v716 = vpop.f32.mrf.mxu0
        %v717 = vadd.f32 0.0, %v716
        %718 = vmatmul.f32.gmra.mxu0 %v557
        %v719 = vpop.f32.mrf.mxu0
        %v720 = vadd.f32 0.0, %v719
        %721 = vmatmul.f32.gmra.mxu0 %v560
        %v722 = vpop.f32.mrf.mxu0
        %v723 = vadd.f32 0.0, %v722
        %724 = vmatmul.f32.gmra.mxu0 %v563
        %v725 = vpop.f32.mrf.mxu0
        %v726 = vadd.f32 0.0, %v725
        %727 = vmatmul.f32.gmra.mxu0 %v566
        %v728 = vpop.f32.mrf.mxu0
        %v729 = vadd.f32 0.0, %v728
        %730 = vmatmul.f32.gmra.mxu0 %v569
        %v731 = vpop.f32.mrf.mxu0
        %v732 = vadd.f32 0.0, %v731
        %733 = vmatmul.f32.gmra.mxu0 %v572
        %v734 = vpop.f32.mrf.mxu0
        %v735 = vadd.f32 0.0, %v734
        %736 = vmatmul.f32.gmra.mxu0 %v575
        %v737 = vpop.f32.mrf.mxu0
        %v738 = vadd.f32 0.0, %v737
        %739 = vmatmul.f32.gmra.mxu0 %v578
        %v740 = vpop.f32.mrf.mxu0
        %v741 = vadd.f32 0.0, %v740
        %742 = vmatmul.f32.gmra.mxu0 %v581
        %v743 = vpop.f32.mrf.mxu0
        %v744 = vadd.f32 0.0, %v743
        %745 = vmatmul.f32.gmra.mxu0 %v584
        %v746 = vpop.f32.mrf.mxu0
        %v747 = vadd.f32 0.0, %v746
        %748 = vdwg.mxu0
        %749 = vmatpush.msra.mxu0 0.0
        %750 = vmatpush.msra.mxu0 0.0
        %751 = vmatpush.msra.mxu0 0.0
        %752 = vmatpush.msra.mxu0 0.0
        %753 = vmatpush.msra.mxu0 0.0
        %754 = vmatpush.msra.mxu0 0.0
        %755 = vmatpush.msra.mxu0 0.0
        %756 = vmatpush.msra.mxu0 0.0
        %757 = vmatpush.msra.mxu0 0.0
        %758 = vmatpush.msra.mxu0 0.0
        %759 = vmatpush.msra.mxu0 0.0
        %760 = vmatpush.msra.mxu0 0.0
        %761 = vmatpush.msra.mxu0 0.0
        %762 = vmatpush.msra.mxu0 0.0
        %763 = vmatpush.msra.mxu0 %v679
        %764 = vmatpush.msra.mxu0 %v678
        %765 = vmatmul.f32.gmra.mxu0 %v610
        %v766 = vpop.f32.mrf.mxu0
        %v767 = vadd.f32 %v702, %v766
        %768 = vmatmul.f32.gmra.mxu0 %v613
        %v769 = vpop.f32.mrf.mxu0
        %v770 = vadd.f32 %v705, %v769
        %771 = vmatmul.f32.gmra.mxu0 %v616
        %v772 = vpop.f32.mrf.mxu0
        %v773 = vadd.f32 %v708, %v772
        %774 = vmatmul.f32.gmra.mxu0 %v619
        %v775 = vpop.f32.mrf.mxu0
        %v776 = vadd.f32 %v711, %v775
        %777 = vmatmul.f32.gmra.mxu0 %v622
        %v778 = vpop.f32.mrf.mxu0
        %v779 = vadd.f32 %v714, %v778
        %780 = vmatmul.f32.gmra.mxu0 %v625
        %v781 = vpop.f32.mrf.mxu0
        %v782 = vadd.f32 %v717, %v781
        %783 = vmatmul.f32.gmra.mxu0 %v628
        %v784 = vpop.f32.mrf.mxu0
        %v785 = vadd.f32 %v720, %v784
        %786 = vmatmul.f32.gmra.mxu0 %v631
        %v787 = vpop.f32.mrf.mxu0
        %v788 = vadd.f32 %v723, %v787
        %789 = vmatmul.f32.gmra.mxu0 %v634
        %v790 = vpop.f32.mrf.mxu0
        %v791 = vadd.f32 %v726, %v790
        %792 = vmatmul.f32.gmra.mxu0 %v637
        %v793 = vpop.f32.mrf.mxu0
        %v794 = vadd.f32 %v729, %v793
        %795 = vmatmul.f32.gmra.mxu0 %v640
        %v796 = vpop.f32.mrf.mxu0
        %v797 = vadd.f32 %v732, %v796
        %798 = vmatmul.f32.gmra.mxu0 %v643
        %v799 = vpop.f32.mrf.mxu0
        %v800 = vadd.f32 %v735, %v799
        %801 = vmatmul.f32.gmra.mxu0 %v646
        %v802 = vpop.f32.mrf.mxu0
        %v803 = vadd.f32 %v738, %v802
        %804 = vmatmul.f32.gmra.mxu0 %v649
        %v805 = vpop.f32.mrf.mxu0
        %v806 = vadd.f32 %v741, %v805
        %807 = vmatmul.f32.gmra.mxu0 %v652
        %v808 = vpop.f32.mrf.mxu0
        %v809 = vadd.f32 %v744, %v808
        %810 = vmatmul.f32.gmra.mxu0 %v655
        %v811 = vpop.f32.mrf.mxu0
        %v812 = vadd.f32 %v747, %v811
        %813 = vdwg.mxu0
        %vm814 = vcmask 7168
        %815 = vst.msk [vmem:[%s379] sm:$0xff] %vm814, %v767
        %816 = vst.msk [vmem:[%s379 + $0x8] sm:$0xff] %vm814, %v770
        %817 = vst.msk [vmem:[%s379 + $0x10] sm:$0xff] %vm814, %v773
        %818 = vst.msk [vmem:[%s379 + $0x18] sm:$0xff] %vm814, %v776
        %819 = vst.msk [vmem:[%s379 + $0x20] sm:$0xff] %vm814, %v779
        %820 = vst.msk [vmem:[%s379 + $0x28] sm:$0xff] %vm814, %v782
        %821 = vst.msk [vmem:[%s379 + $0x30] sm:$0xff] %vm814, %v785
        %822 = vst.msk [vmem:[%s379 + $0x38] sm:$0xff] %vm814, %v788
        %823 = vst.msk [vmem:[%s379 + $0x40] sm:$0xff] %vm814, %v791
        %824 = vst.msk [vmem:[%s379 + $0x48] sm:$0xff] %vm814, %v794
        %825 = vst.msk [vmem:[%s379 + $0x50] sm:$0xff] %vm814, %v797
        %826 = vst.msk [vmem:[%s379 + $0x58] sm:$0xff] %vm814, %v800
        %827 = vst.msk [vmem:[%s379 + $0x60] sm:$0xff] %vm814, %v803
        %828 = vst.msk [vmem:[%s379 + $0x68] sm:$0xff] %vm814, %v806
        %829 = vst.msk [vmem:[%s379 + $0x70] sm:$0xff] %vm814, %v809
        %830 = vst.msk [vmem:[%s379 + $0x78] sm:$0xff] %vm814, %v812
        %s831 = smul.u32 16, %s24
        %p832 = scmp.lt.s32.totalorder %s831, 31
        %s833 = scalar_select %p832, %s831, 31
        %s834 = smul.addr %s833, 4
        %s835 = scalar_lea.vmem %s7, %s834
        %s836 = sand.u32 %s215, 1
        %s837 = scalar_lea.sflag [#allocation3], %s836
        %s838 = sand.u32 %s215, 1
        %s839 = scalar_lea.vmem [#allocation2], %s838
        %s840 = smul.u32 16, %s24
        %p841 = scmp.lt.s32.totalorder %s840, 31
        %s842 = scalar_select %p841, %s840, 31
        %s843 = smul.addr %s842, 8
        %s844 = scalar_lea.vmem %s9, %s843
        // Predicated region
        $region49: #{tpu_custom_call.1} parent=47 // pred_check
          %p845 = pneg %p199
        $region50: #{tpu_custom_call.1} parent=47 // pred_check_branch
          %847 = sbr.rel (%p845) target = $region52
        $region51: #{tpu_custom_call.1} parent=47 // pred_region
          %s848 = smul.u32 16, %s24
        $region52: #{tpu_custom_call.1} parent=47 // pred_fallthru
          _
        // Predicated region
        $region53: #{tpu_custom_call.1} parent=47 // pred_check
          %p849 = pneg %p225
        $region54: #{tpu_custom_call.1} parent=47 // pred_check_branch
          %851 = sbr.rel (%p849) target = $region56
        $region55: #{tpu_custom_call.1} parent=47 // pred_region
          %853 = vsyncadd %s837, 0
          %s854 = scalar_lea.hbm %s8, %s24
          %s856 = sshll.u32 %s839, 4
          %s857 = int_to_ptr.vmem [resolvable:$true] %s856
          %s858 = sshll.u32 %s854, 4
          %s859 = int_to_ptr.hbm [resolvable:$true] %s858
          %861 = dma.vmem_to_hbm [thread:$0]  %s857, 16, %s859, %s837
        $region56: #{tpu_custom_call.1} parent=47 // pred_fallthru
          _
        // Predicated region
        $region57: #{tpu_custom_call.1} parent=47 // pred_check
          %p862 = pneg %p251
        $region58: #{tpu_custom_call.1} parent=47 // pred_check_branch
          %864 = sbr.rel (%p862) target = $region60
        $region59: #{tpu_custom_call.1} parent=47 // pred_region
          %s865 = smul.u32 16, %s24
        $region60: #{tpu_custom_call.1} parent=47 // pred_fallthru
          _
      $region48: #{tpu_custom_call.1} parent=5 // pred_fallthru
        _
      %p866 = scmp.le.s32.totalorder 2, %s19
      // Predicated region
      $region61: #{tpu_custom_call.1} parent=5 // pred_check
        %p867 = pneg %p866
      $region62: #{tpu_custom_call.1} parent=5 // pred_check_branch
        %869 = sbr.rel (%p867) target = $region64
      $region63: #{tpu_custom_call.1} parent=5 // pred_region
        %s870 = ssub.s32 %s19, 2
        // Predicated region
        $region65: #{tpu_custom_call.1} parent=63 // pred_check
          %p871 = pneg %p205
        $region66: #{tpu_custom_call.1} parent=63 // pred_check_branch
          %873 = sbr.rel (%p871) target = $region68
        $region67: #{tpu_custom_call.1} parent=63 // pred_region
          %s874 = smul.u32 16, %s25
          %p875 = scmp.lt.s32.totalorder %s874, 31
          %s876 = scalar_select %p875, %s874, 31
          %s877 = smul.addr %s876, 4
          %s878 = scalar_lea.vmem %s7, %s877
        $region68: #{tpu_custom_call.1} parent=63 // pred_fallthru
          _
        // Predicated region
        $region69: #{tpu_custom_call.1} parent=63 // pred_check
          %p879 = pneg %p231
        $region70: #{tpu_custom_call.1} parent=63 // pred_check_branch
          %881 = sbr.rel (%p879) target = $region72
        $region71: #{tpu_custom_call.1} parent=63 // pred_region
          %s882 = sand.u32 %s216, 1
          %s883 = scalar_lea.sflag [#allocation3], %s882
          %s884 = sand.u32 %s216, 1
          %s885 = scalar_lea.vmem [#allocation2], %s884
          %887 = dma.done %s883, 16
        $region72: #{tpu_custom_call.1} parent=63 // pred_fallthru
          _
        // Predicated region
        $region73: #{tpu_custom_call.1} parent=63 // pred_check
          %p888 = pneg %p257
        $region74: #{tpu_custom_call.1} parent=63 // pred_check_branch
          %890 = sbr.rel (%p888) target = $region76
        $region75: #{tpu_custom_call.1} parent=63 // pred_region
          %s891 = smul.u32 16, %s25
          %p892 = scmp.lt.s32.totalorder %s891, 31
          %s893 = scalar_select %p892, %s891, 31
          %s894 = smul.addr %s893, 8
          %s895 = scalar_lea.vmem %s9, %s894
        $region76: #{tpu_custom_call.1} parent=63 // pred_fallthru
          _
      $region64: #{tpu_custom_call.1} parent=5 // pred_fallthru
        _
    $region6: #{tpu_custom_call.1} parent=1 // loop_footer
      %s23 = sadd.s32 1, %s19
    $region7: #{tpu_custom_call.1} parent=1 // loop_footer_branch
      %18 = sbr.rel target = $region3
    $region8: #{tpu_custom_call.1} parent=1 // loop_exit
      _
    %896 = vsyncpa [#allocation3], 1
    %s897 = scalar_lea.sflag [#allocation3], 1
    %898 = vsyncpa %s897, 1

</llo_original>
